<compile_context>
chip_gen: v5e
topology: v5e:2x2
jax: 0.10.0
libtpu: 0.0.40
codegen_flags: <defaults>
</compile_context>

<pallas_src>
import jax
import jax.numpy as jnp
from jax.experimental import pallas as pl
from jax.experimental.pallas import tpu as pltpu


def _round_up(n: int, m: int) -> int:
    return ((n + m - 1) // m) * m


def mlp_kernel(x_ref,
               w1, b1, w2, b2, w3, b3, w4, b4, w5, b5, w6, b6,
               o_ref):
    layers = ((w1, b1), (w2, b2), (w3, b3), (w4, b4), (w5, b5), (w6, b6))
    h = x_ref[...]                                    # bf16 batch tile
    for li, (w_ref, b_ref) in enumerate(layers):
        # bf16 operands into the MXU, f32 accumulation; bias + ReLU in f32.
        y = jnp.dot(h, w_ref[...], preferred_element_type=jnp.float32)
        a = jnp.maximum(y + b_ref[...], 0.0)
        # Inter-layer activation stays bf16 (halves vreg/VMEM traffic);
        # final layer kept f32 for the output store.
        h = a if li == len(layers) - 1 else a.astype(jnp.bfloat16)
    o_ref[...] = h.astype(o_ref.dtype)


def prepare_params(params):
    """One-time static prep (call once, outside the per-step path).

    Weights -> bf16, zero-padded so every layer's OUTPUT width is a multiple
    of 128 lanes (padded activation columns stay exactly 0 through bias+ReLU,
    so correctness is preserved).  Layer-1 input dim is left unpadded so x
    needs no feature padding.  Biases -> f32, padded to match.
    Returns a flat list [W1,b1, W2,b2, ..., W6,b6].
    """
    flat = []
    for li, (w, b) in enumerate(params):
        fi, fo = w.shape
        fi_p = fi if li == 0 else _round_up(fi, 128)
        fo_p = _round_up(fo, 128)
        w_p = jnp.pad(w.astype(jnp.bfloat16), ((0, fi_p - fi), (0, fo_p - fo)))
        b_p = jnp.pad(b.astype(jnp.float32).reshape(1, -1),
                      ((0, 0), (0, fo_p - fo)))
        flat.extend([w_p, b_p])
    return flat


def four_layer_net(x, flat_params, d_out, out_dtype=None):
    """x: [B, d_in]; flat_params: prepare_params(...) output; d_out: true
    output width.  Pass out_dtype=jnp.bfloat16 to halve output HBM traffic
    when downstream tolerates it."""
    B, d_in = x.shape
    out_dtype = out_dtype or x.dtype
    d_out_p = flat_params[-2].shape[1]          # padded width of last layer
    h_p_max = max(w.shape[1] for w in flat_params[::2])

    # ---- batch tiling (no padding of x; Pallas masks the ragged last block) --
    if B <= 128:
        tm = _round_up(B, 8)                    # single step; launch-bound anyway
    elif B <= 1024:
        tm = _round_up(-(-B // 2), 8)           # >=2 steps -> both v7x TCs busy
    else:
        tm = 512                                # ~85% of HBM roofline (vs ~63% @256)
    grid = (pl.cdiv(B, tm),)

    # Single cast (fuses with the producer under jit); no pad of x at all.
    x_bf = x.astype(jnp.bfloat16)

    x_spec = pl.BlockSpec((tm, d_in), lambda i: (i, 0))
    # Constant index_map -> weights/biases resident across the grid;
    # Buffered(1) = single-buffered (no pointless double buffer for constants).
    w_specs = [pl.BlockSpec(a.shape, lambda i: (0, 0),
                            pipeline_mode=pl.Buffered(1))
               for a in flat_params]

    # VMEM budget: resident weights/biases + double-buffered x/out tiles +
    # f32 activation temporaries, with 2x headroom; capped at 64 MiB (v7x).
    resident = sum(int(a.size) * a.dtype.itemsize for a in flat_params)
    tiles = 2 * tm * d_in * 2 + 2 * tm * d_out_p * jnp.dtype(out_dtype).itemsize
    acts = 4 * tm * h_p_max * 4
    vmem_limit = int(min(max(2 * (resident + tiles + acts), 32 * 2 ** 20),
                         64 * 2 ** 20))
    # TODO(synk): if resident bf16 weights exceed ~40 MiB (H >~ 2k on v7x's
    # 64 MiB VMEM), switch to tiling the hidden dim with a trailing
    # "arbitrary" reduction grid axis instead of whole-array weight blocks.

    out = pl.pallas_call(
        mlp_kernel,
        out_shape=jax.ShapeDtypeStruct((B, d_out_p), out_dtype),
        grid_spec=pltpu.PrefetchScalarGridSpec(
            num_scalar_prefetch=0,
            grid=grid,
            in_specs=[x_spec] + w_specs,
            out_specs=pl.BlockSpec((tm, d_out_p), lambda i: (i, 0)),
        ),
        compiler_params=pltpu.CompilerParams(
            dimension_semantics=("parallel",),   # shards steps across v7x TCs
            vmem_limit_bytes=vmem_limit),
    )(x_bf, *flat_params)

    return out[:, :d_out]


def init_params(key, d_in, H, d_out):
    """nn.Linear-style init; W stored as [in, out], b as [1, out], f32."""
    dims = [(d_in, H), (H, H), (H, H), (H, H), (H, H), (H, d_out)]
    params = []
    for fan_in, fan_out in dims:
        key, kw, kb = jax.random.split(key, 3)
        bound = 1.0 / jnp.sqrt(fan_in)
        w = jax.random.uniform(kw, (fan_in, fan_out), jnp.float32, -bound, bound)
        b = jax.random.uniform(kb, (1, fan_out), jnp.float32, -bound, bound)
        params.append((w, b))
    return params


def reference(x, params):
    # Mirrors the PyTorch forward: ReLU after every linear (incl. the last);
    # Dropout(p=0) is identity.
    h = x
    for w, b in params:
        h = jnp.maximum(h @ w + b, 0.0)
    return h


if __name__ == "__main__":
    B, d_in, H, d_out = 16, 32, 64, 32
    key = jax.random.PRNGKey(0)
    kx, kp = jax.random.split(key)
    x = jax.random.normal(kx, (B, d_in), jnp.float32)
    params = init_params(kp, d_in, H, d_out)

    flat_params = prepare_params(params)        # one-time static prep
    out = four_layer_net(x, flat_params, d_out)
    out = jax.block_until_ready(out)

    ref = reference(x, params)
    assert out.shape == (B, d_out)
    # bf16 MXU operands / bf16 inter-layer activations vs f32 reference.
    assert jnp.allclose(out, ref, atol=5e-2, rtol=5e-2), (
        "max abs err = %f" % float(jnp.max(jnp.abs(out - ref))))
    print("KERNEL_OK")
</pallas_src>

<mosaic_0001>
module attributes {stable_mosaic.version = 11 : i64} {
  func.func @mlp_kernel(%arg0: i32, %arg1: memref<16x32xbf16, #tpu.memory_space<vmem>>, %arg2: memref<32x128xbf16, #tpu.memory_space<vmem>>, %arg3: memref<1x128xf32, #tpu.memory_space<vmem>>, %arg4: memref<128x128xbf16, #tpu.memory_space<vmem>>, %arg5: memref<1x128xf32, #tpu.memory_space<vmem>>, %arg6: memref<128x128xbf16, #tpu.memory_space<vmem>>, %arg7: memref<1x128xf32, #tpu.memory_space<vmem>>, %arg8: memref<128x128xbf16, #tpu.memory_space<vmem>>, %arg9: memref<1x128xf32, #tpu.memory_space<vmem>>, %arg10: memref<128x128xbf16, #tpu.memory_space<vmem>>, %arg11: memref<1x128xf32, #tpu.memory_space<vmem>>, %arg12: memref<128x128xbf16, #tpu.memory_space<vmem>>, %arg13: memref<1x128xf32, #tpu.memory_space<vmem>>, %arg14: memref<16x128xf32, #tpu.memory_space<vmem>>) attributes {dimension_semantics = [#tpu.dimension_semantics<parallel>], iteration_bounds = array<i64: 1>, scalar_prefetch = 0 : i64, scratch_operands = 0 : i64, tpu.core_type = #tpu.core_type<tc>, window_params = [{transform_indices = @transform_0, window_bounds = array<i64: 16, 32>}, {pipeline_mode = #tpu.pipeline_mode<synchronous>, transform_indices = @transform_1, window_bounds = array<i64: 32, 128>}, {pipeline_mode = #tpu.pipeline_mode<synchronous>, transform_indices = @transform_2, window_bounds = array<i64: 1, 128>}, {pipeline_mode = #tpu.pipeline_mode<synchronous>, transform_indices = @transform_3, window_bounds = array<i64: 128, 128>}, {pipeline_mode = #tpu.pipeline_mode<synchronous>, transform_indices = @transform_4, window_bounds = array<i64: 1, 128>}, {pipeline_mode = #tpu.pipeline_mode<synchronous>, transform_indices = @transform_5, window_bounds = array<i64: 128, 128>}, {pipeline_mode = #tpu.pipeline_mode<synchronous>, transform_indices = @transform_6, window_bounds = array<i64: 1, 128>}, {pipeline_mode = #tpu.pipeline_mode<synchronous>, transform_indices = @transform_7, window_bounds = array<i64: 128, 128>}, {pipeline_mode = #tpu.pipeline_mode<synchronous>, transform_indices = @transform_8, window_bounds = array<i64: 1, 128>}, {pipeline_mode = #tpu.pipeline_mode<synchronous>, transform_indices = @transform_9, window_bounds = array<i64: 128, 128>}, {pipeline_mode = #tpu.pipeline_mode<synchronous>, transform_indices = @transform_10, window_bounds = array<i64: 1, 128>}, {pipeline_mode = #tpu.pipeline_mode<synchronous>, transform_indices = @transform_11, window_bounds = array<i64: 128, 128>}, {pipeline_mode = #tpu.pipeline_mode<synchronous>, transform_indices = @transform_12, window_bounds = array<i64: 1, 128>}, {transform_indices = @transform_13, window_bounds = array<i64: 16, 128>}]} {
    %c0 = arith.constant 0 : index
    %c0_0 = arith.constant 0 : index
    %0 = vector.load %arg1[%c0, %c0_0] : memref<16x32xbf16, #tpu.memory_space<vmem>>, vector<16x32xbf16>
    %c0_1 = arith.constant 0 : index
    %c0_2 = arith.constant 0 : index
    %1 = vector.load %arg2[%c0_1, %c0_2] : memref<32x128xbf16, #tpu.memory_space<vmem>>, vector<32x128xbf16>
    %cst = arith.constant dense<0.000000e+00> : vector<16x128xf32>
    %2 = tpu.matmul %0, %1, %cst {dimension_numbers = #tpu.dot_dimension_numbers<[1], [0], [0], [1], [0, 0, 1, 1], [], []>} : vector<16x32xbf16>, vector<32x128xbf16>, vector<16x128xf32> -> vector<16x128xf32>
    %c0_3 = arith.constant 0 : index
    %c0_4 = arith.constant 0 : index
    %3 = vector.load %arg3[%c0_3, %c0_4] : memref<1x128xf32, #tpu.memory_space<vmem>>, vector<1x128xf32>
    %4 = vector.broadcast %3 : vector<1x128xf32> to vector<16x128xf32>
    %5 = arith.addf %2, %4 : vector<16x128xf32>
    %cst_5 = arith.constant 0.000000e+00 : f32
    %6 = vector.broadcast %cst_5 : f32 to vector<16x128xf32>
    %7 = arith.maximumf %5, %6 : vector<16x128xf32>
    %8 = arith.truncf %7 : vector<16x128xf32> to vector<16x128xbf16>
    %c0_6 = arith.constant 0 : index
    %c0_7 = arith.constant 0 : index
    %9 = vector.load %arg4[%c0_6, %c0_7] : memref<128x128xbf16, #tpu.memory_space<vmem>>, vector<128x128xbf16>
    %cst_8 = arith.constant dense<0.000000e+00> : vector<16x128xf32>
    %10 = tpu.matmul %8, %9, %cst_8 {dimension_numbers = #tpu.dot_dimension_numbers<[1], [0], [0], [1], [0, 0, 1, 1], [], []>} : vector<16x128xbf16>, vector<128x128xbf16>, vector<16x128xf32> -> vector<16x128xf32>
    %c0_9 = arith.constant 0 : index
    %c0_10 = arith.constant 0 : index
    %11 = vector.load %arg5[%c0_9, %c0_10] : memref<1x128xf32, #tpu.memory_space<vmem>>, vector<1x128xf32>
    %12 = vector.broadcast %11 : vector<1x128xf32> to vector<16x128xf32>
    %13 = arith.addf %10, %12 : vector<16x128xf32>
    %cst_11 = arith.constant 0.000000e+00 : f32
    %14 = vector.broadcast %cst_11 : f32 to vector<16x128xf32>
    %15 = arith.maximumf %13, %14 : vector<16x128xf32>
    %16 = arith.truncf %15 : vector<16x128xf32> to vector<16x128xbf16>
    %c0_12 = arith.constant 0 : index
    %c0_13 = arith.constant 0 : index
    %17 = vector.load %arg6[%c0_12, %c0_13] : memref<128x128xbf16, #tpu.memory_space<vmem>>, vector<128x128xbf16>
    %cst_14 = arith.constant dense<0.000000e+00> : vector<16x128xf32>
    %18 = tpu.matmul %16, %17, %cst_14 {dimension_numbers = #tpu.dot_dimension_numbers<[1], [0], [0], [1], [0, 0, 1, 1], [], []>} : vector<16x128xbf16>, vector<128x128xbf16>, vector<16x128xf32> -> vector<16x128xf32>
    %c0_15 = arith.constant 0 : index
    %c0_16 = arith.constant 0 : index
    %19 = vector.load %arg7[%c0_15, %c0_16] : memref<1x128xf32, #tpu.memory_space<vmem>>, vector<1x128xf32>
    %20 = vector.broadcast %19 : vector<1x128xf32> to vector<16x128xf32>
    %21 = arith.addf %18, %20 : vector<16x128xf32>
    %cst_17 = arith.constant 0.000000e+00 : f32
    %22 = vector.broadcast %cst_17 : f32 to vector<16x128xf32>
    %23 = arith.maximumf %21, %22 : vector<16x128xf32>
    %24 = arith.truncf %23 : vector<16x128xf32> to vector<16x128xbf16>
    %c0_18 = arith.constant 0 : index
    %c0_19 = arith.constant 0 : index
    %25 = vector.load %arg8[%c0_18, %c0_19] : memref<128x128xbf16, #tpu.memory_space<vmem>>, vector<128x128xbf16>
    %cst_20 = arith.constant dense<0.000000e+00> : vector<16x128xf32>
    %26 = tpu.matmul %24, %25, %cst_20 {dimension_numbers = #tpu.dot_dimension_numbers<[1], [0], [0], [1], [0, 0, 1, 1], [], []>} : vector<16x128xbf16>, vector<128x128xbf16>, vector<16x128xf32> -> vector<16x128xf32>
    %c0_21 = arith.constant 0 : index
    %c0_22 = arith.constant 0 : index
    %27 = vector.load %arg9[%c0_21, %c0_22] : memref<1x128xf32, #tpu.memory_space<vmem>>, vector<1x128xf32>
    %28 = vector.broadcast %27 : vector<1x128xf32> to vector<16x128xf32>
    %29 = arith.addf %26, %28 : vector<16x128xf32>
    %cst_23 = arith.constant 0.000000e+00 : f32
    %30 = vector.broadcast %cst_23 : f32 to vector<16x128xf32>
    %31 = arith.maximumf %29, %30 : vector<16x128xf32>
    %32 = arith.truncf %31 : vector<16x128xf32> to vector<16x128xbf16>
    %c0_24 = arith.constant 0 : index
    %c0_25 = arith.constant 0 : index
    %33 = vector.load %arg10[%c0_24, %c0_25] : memref<128x128xbf16, #tpu.memory_space<vmem>>, vector<128x128xbf16>
    %cst_26 = arith.constant dense<0.000000e+00> : vector<16x128xf32>
    %34 = tpu.matmul %32, %33, %cst_26 {dimension_numbers = #tpu.dot_dimension_numbers<[1], [0], [0], [1], [0, 0, 1, 1], [], []>} : vector<16x128xbf16>, vector<128x128xbf16>, vector<16x128xf32> -> vector<16x128xf32>
    %c0_27 = arith.constant 0 : index
    %c0_28 = arith.constant 0 : index
    %35 = vector.load %arg11[%c0_27, %c0_28] : memref<1x128xf32, #tpu.memory_space<vmem>>, vector<1x128xf32>
    %36 = vector.broadcast %35 : vector<1x128xf32> to vector<16x128xf32>
    %37 = arith.addf %34, %36 : vector<16x128xf32>
    %cst_29 = arith.constant 0.000000e+00 : f32
    %38 = vector.broadcast %cst_29 : f32 to vector<16x128xf32>
    %39 = arith.maximumf %37, %38 : vector<16x128xf32>
    %40 = arith.truncf %39 : vector<16x128xf32> to vector<16x128xbf16>
    %c0_30 = arith.constant 0 : index
    %c0_31 = arith.constant 0 : index
    %41 = vector.load %arg12[%c0_30, %c0_31] : memref<128x128xbf16, #tpu.memory_space<vmem>>, vector<128x128xbf16>
    %cst_32 = arith.constant dense<0.000000e+00> : vector<16x128xf32>
    %42 = tpu.matmul %40, %41, %cst_32 {dimension_numbers = #tpu.dot_dimension_numbers<[1], [0], [0], [1], [0, 0, 1, 1], [], []>} : vector<16x128xbf16>, vector<128x128xbf16>, vector<16x128xf32> -> vector<16x128xf32>
    %c0_33 = arith.constant 0 : index
    %c0_34 = arith.constant 0 : index
    %43 = vector.load %arg13[%c0_33, %c0_34] : memref<1x128xf32, #tpu.memory_space<vmem>>, vector<1x128xf32>
    %44 = vector.broadcast %43 : vector<1x128xf32> to vector<16x128xf32>
    %45 = arith.addf %42, %44 : vector<16x128xf32>
    %cst_35 = arith.constant 0.000000e+00 : f32
    %46 = vector.broadcast %cst_35 : f32 to vector<16x128xf32>
    %47 = arith.maximumf %45, %46 : vector<16x128xf32>
    %c0_36 = arith.constant 0 : index
    %c0_37 = arith.constant 0 : index
    %48 = vector.load %arg14[%c0_36, %c0_37] : memref<16x128xf32, #tpu.memory_space<vmem>>, vector<16x128xf32>
    tpu.vector_store %arg14[%c0_36, %c0_37], %47 {strides = array<i32>} : memref<16x128xf32, #tpu.memory_space<vmem>>, vector<16x128xf32>,
    return
  }
  func.func @transform_0(%arg0: i32) -> (i32, i32) {
    %c0_i32 = arith.constant 0 : i32
    %c0_i32_0 = arith.constant 0 : i32
    return %arg0, %c0_i32 : i32, i32
  }
  func.func @transform_1(%arg0: i32) -> (i32, i32) {
    %c0_i32 = arith.constant 0 : i32
    %c0_i32_0 = arith.constant 0 : i32
    %c0_i32_1 = arith.constant 0 : i32
    return %c0_i32, %c0_i32_0 : i32, i32
  }
  func.func @transform_2(%arg0: i32) -> (i32, i32) {
    %c0_i32 = arith.constant 0 : i32
    %c0_i32_0 = arith.constant 0 : i32
    %c0_i32_1 = arith.constant 0 : i32
    return %c0_i32, %c0_i32_0 : i32, i32
  }
  func.func @transform_3(%arg0: i32) -> (i32, i32) {
    %c0_i32 = arith.constant 0 : i32
    %c0_i32_0 = arith.constant 0 : i32
    %c0_i32_1 = arith.constant 0 : i32
    return %c0_i32, %c0_i32_0 : i32, i32
  }
  func.func @transform_4(%arg0: i32) -> (i32, i32) {
    %c0_i32 = arith.constant 0 : i32
    %c0_i32_0 = arith.constant 0 : i32
    %c0_i32_1 = arith.constant 0 : i32
    return %c0_i32, %c0_i32_0 : i32, i32
  }
  func.func @transform_5(%arg0: i32) -> (i32, i32) {
    %c0_i32 = arith.constant 0 : i32
    %c0_i32_0 = arith.constant 0 : i32
    %c0_i32_1 = arith.constant 0 : i32
    return %c0_i32, %c0_i32_0 : i32, i32
  }
  func.func @transform_6(%arg0: i32) -> (i32, i32) {
    %c0_i32 = arith.constant 0 : i32
    %c0_i32_0 = arith.constant 0 : i32
    %c0_i32_1 = arith.constant 0 : i32
    return %c0_i32, %c0_i32_0 : i32, i32
  }
  func.func @transform_7(%arg0: i32) -> (i32, i32) {
    %c0_i32 = arith.constant 0 : i32
    %c0_i32_0 = arith.constant 0 : i32
    %c0_i32_1 = arith.constant 0 : i32
    return %c0_i32, %c0_i32_0 : i32, i32
  }
  func.func @transform_8(%arg0: i32) -> (i32, i32) {
    %c0_i32 = arith.constant 0 : i32
    %c0_i32_0 = arith.constant 0 : i32
    %c0_i32_1 = arith.constant 0 : i32
    return %c0_i32, %c0_i32_0 : i32, i32
  }
  func.func @transform_9(%arg0: i32) -> (i32, i32) {
    %c0_i32 = arith.constant 0 : i32
    %c0_i32_0 = arith.constant 0 : i32
    %c0_i32_1 = arith.constant 0 : i32
    return %c0_i32, %c0_i32_0 : i32, i32
  }
  func.func @transform_10(%arg0: i32) -> (i32, i32) {
    %c0_i32 = arith.constant 0 : i32
    %c0_i32_0 = arith.constant 0 : i32
    %c0_i32_1 = arith.constant 0 : i32
    return %c0_i32, %c0_i32_0 : i32, i32
  }
  func.func @transform_11(%arg0: i32) -> (i32, i32) {
    %c0_i32 = arith.constant 0 : i32
    %c0_i32_0 = arith.constant 0 : i32
    %c0_i32_1 = arith.constant 0 : i32
    return %c0_i32, %c0_i32_0 : i32, i32
  }
  func.func @transform_12(%arg0: i32) -> (i32, i32) {
    %c0_i32 = arith.constant 0 : i32
    %c0_i32_0 = arith.constant 0 : i32
    %c0_i32_1 = arith.constant 0 : i32
    return %c0_i32, %c0_i32_0 : i32, i32
  }
  func.func @transform_13(%arg0: i32) -> (i32, i32) {
    %c0_i32 = arith.constant 0 : i32
    %c0_i32_0 = arith.constant 0 : i32
    return %arg0, %c0_i32 : i32, i32
  }
}

</mosaic_0001>

<llo_original>
// kernel: tpu_custom_call.1
$region0: #{tpu_custom_call.1}
  #allocation0 [shape = 'u32[]', space=smem, size = 0x4, offset = 0x4, fixed_abs, tag = 'smem constant byte address 0x4 - core index']
  #allocation1 [shape = 'u32[72,128]{1,0:T(1,128)}', space=vmem, size = 0x9000, scoped, tag = 'internal scratch']
  %s0 = inlined_call_operand.hbm [shape: bf16[16,32], index: 0, kind: input, shape index: {}]
  %s1 = inlined_call_operand.hbm [shape: bf16[32,128], index: 1, kind: input, shape index: {}]
  %s2 = inlined_call_operand.vmem [shape: f32[1,128], index: 2, kind: input, shape index: {}]
  %s3 = inlined_call_operand.hbm [shape: bf16[128,128], index: 3, kind: input, shape index: {}]
  %s4 = inlined_call_operand.vmem [shape: f32[1,128], index: 4, kind: input, shape index: {}]
  %s5 = inlined_call_operand.hbm [shape: bf16[128,128], index: 5, kind: input, shape index: {}]
  %s6 = inlined_call_operand.vmem [shape: f32[1,128], index: 6, kind: input, shape index: {}]
  %s7 = inlined_call_operand.hbm [shape: bf16[128,128], index: 7, kind: input, shape index: {}]
  %s8 = inlined_call_operand.vmem [shape: f32[1,128], index: 8, kind: input, shape index: {}]
  %s9 = inlined_call_operand.hbm [shape: bf16[128,128], index: 9, kind: input, shape index: {}]
  %s10 = inlined_call_operand.vmem [shape: f32[1,128], index: 10, kind: input, shape index: {}]
  %s11 = inlined_call_operand.hbm [shape: bf16[128,128], index: 11, kind: input, shape index: {}]
  %s12 = inlined_call_operand.vmem [shape: f32[1,128], index: 12, kind: input, shape index: {}]
  %s13 = inlined_call_operand.hbm [shape: f32[16,128], index: 13, kind: output, shape index: {}]
  %s14 = sld [smem:[#allocation0]]
  $region90: #{tpu_custom_call.1} parent=0
    _
  %s16 = ssub.s32 1, %s14
  %s17 = scalar_select 0, %s16, %s14
  $region1: #{tpu_custom_call.1} parent=0
    #allocation2 [shape = 'u8[4096]{0}', space=vmem, size = 0x1000, scoped, tag = 'input window, operand 0, single buffered']
    #allocation3 [shape = 's32[1]{0}', space=sflag, size = 0x4, scoped, tag = 'scoped memory for tpu_custom_call.1']
    #allocation4 [shape = 's32[1]{0}', space=sflag, size = 0x4, scoped, tag = 'scoped memory for tpu_custom_call.1']
    #allocation5 [shape = 'u8[8192]{0}', space=vmem, size = 0x2000, scoped, tag = 'input window, operand 1, single buffered']
    #allocation6 [shape = 's32[1]{0}', space=sflag, size = 0x4, scoped, tag = 'scoped memory for tpu_custom_call.1']
    #allocation7 [shape = 'u8[32768]{0}', space=vmem, size = 0x8000, scoped, tag = 'input window, operand 3, single buffered']
    #allocation8 [shape = 'u8[32768]{0}', space=vmem, size = 0x8000, scoped, tag = 'input window, operand 5, single buffered']
    #allocation9 [shape = 's32[1]{0}', space=sflag, size = 0x4, scoped, tag = 'scoped memory for tpu_custom_call.1']
    #allocation10 [shape = 'u8[32768]{0}', space=vmem, size = 0x8000, scoped, tag = 'input window, operand 7, single buffered']
    #allocation11 [shape = 'u8[32768]{0}', space=vmem, size = 0x8000, scoped, tag = 'input window, operand 9, single buffered']
    #allocation12 [shape = 's32[1]{0}', space=sflag, size = 0x4, scoped, tag = 'scoped memory for tpu_custom_call.1']
    #allocation13 [shape = 'u8[32768]{0}', space=vmem, size = 0x8000, scoped, tag = 'input window, operand 11, single buffered']
    #allocation14 [shape = 'u8[8192]{0}', space=vmem, size = 0x2000, scoped, tag = 'output window, operand 0, single buffered']
    %18 = vsyncpa [#allocation3], 0
    %19 = vsyncpa [#allocation6], 0
    %20 = vsyncpa [#allocation9], 0
    %21 = vsyncpa [#allocation12], 0
    %22 = vsyncpa [#allocation4], 0
    // Predicated region
    $region2: #{tpu_custom_call.1} parent=1 // pred_check
      _
    $region3: #{tpu_custom_call.1} parent=1 // pred_check_branch
      %24 = sbr.rel (0) target = $region5
    $region4: #{tpu_custom_call.1} parent=1 // pred_region
      %26 = vsyncadd [#allocation3], 0
      %s27 = sshll.u32 %s0, 4
      %s28 = int_to_ptr.hbm [resolvable:$true] %s27
      %s29 = sshll.u32 [#allocation2], 4
      %s30 = int_to_ptr.vmem [resolvable:$true] %s29
      %35 = dma.hbm_to_vmem [thread:$0]  %s28, 128, %s30, [#allocation3], 64, 64, 4
    $region5: #{tpu_custom_call.1} parent=1 // pred_fallthru
      _
    // Predicated region
    $region6: #{tpu_custom_call.1} parent=1 // pred_check
      _
    $region7: #{tpu_custom_call.1} parent=1 // pred_check_branch
      %37 = sbr.rel (0) target = $region9
    $region8: #{tpu_custom_call.1} parent=1 // pred_region
      %39 = vsyncadd [#allocation6], 0
      %s40 = sshll.u32 %s1, 4
      %s41 = int_to_ptr.hbm [resolvable:$true] %s40
      %s42 = sshll.u32 [#allocation5], 4
      %s43 = int_to_ptr.vmem [resolvable:$true] %s42
      %48 = dma.hbm_to_vmem [thread:$0]  %s41, 256, %s43, [#allocation6], 64, 64, 4
    $region9: #{tpu_custom_call.1} parent=1 // pred_fallthru
      _
    // Predicated region
    $region10: #{tpu_custom_call.1} parent=1 // pred_check
      _
    $region11: #{tpu_custom_call.1} parent=1 // pred_check_branch
      %50 = sbr.rel (0) target = $region13
    $region12: #{tpu_custom_call.1} parent=1 // pred_region
      _
    $region13: #{tpu_custom_call.1} parent=1 // pred_fallthru
      _
    // Predicated region
    $region14: #{tpu_custom_call.1} parent=1 // pred_check
      _
    $region15: #{tpu_custom_call.1} parent=1 // pred_check_branch
      %52 = sbr.rel (0) target = $region17
    $region16: #{tpu_custom_call.1} parent=1 // pred_region
      %54 = vsyncadd [#allocation6], 0
      %s55 = sshll.u32 %s3, 4
      %s56 = int_to_ptr.hbm [resolvable:$true] %s55
      %s57 = sshll.u32 [#allocation7], 4
      %s58 = int_to_ptr.vmem [resolvable:$true] %s57
      %63 = dma.hbm_to_vmem [thread:$0]  %s56, 1024, %s58, [#allocation6], 64, 64, 4
    $region17: #{tpu_custom_call.1} parent=1 // pred_fallthru
      _
    // Predicated region
    $region18: #{tpu_custom_call.1} parent=1 // pred_check
      _
    $region19: #{tpu_custom_call.1} parent=1 // pred_check_branch
      %65 = sbr.rel (0) target = $region21
    $region20: #{tpu_custom_call.1} parent=1 // pred_region
      _
    $region21: #{tpu_custom_call.1} parent=1 // pred_fallthru
      _
    // Predicated region
    $region22: #{tpu_custom_call.1} parent=1 // pred_check
      _
    $region23: #{tpu_custom_call.1} parent=1 // pred_check_branch
      %67 = sbr.rel (0) target = $region25
    $region24: #{tpu_custom_call.1} parent=1 // pred_region
      %69 = vsyncadd [#allocation9], 0
      %s70 = sshll.u32 %s5, 4
      %s71 = int_to_ptr.hbm [resolvable:$true] %s70
      %s72 = sshll.u32 [#allocation8], 4
      %s73 = int_to_ptr.vmem [resolvable:$true] %s72
      %78 = dma.hbm_to_vmem [thread:$0]  %s71, 1024, %s73, [#allocation9], 64, 64, 4
    $region25: #{tpu_custom_call.1} parent=1 // pred_fallthru
      _
    // Predicated region
    $region26: #{tpu_custom_call.1} parent=1 // pred_check
      _
    $region27: #{tpu_custom_call.1} parent=1 // pred_check_branch
      %80 = sbr.rel (0) target = $region29
    $region28: #{tpu_custom_call.1} parent=1 // pred_region
      _
    $region29: #{tpu_custom_call.1} parent=1 // pred_fallthru
      _
    // Predicated region
    $region30: #{tpu_custom_call.1} parent=1 // pred_check
      _
    $region31: #{tpu_custom_call.1} parent=1 // pred_check_branch
      %82 = sbr.rel (0) target = $region33
    $region32: #{tpu_custom_call.1} parent=1 // pred_region
      %84 = vsyncadd [#allocation9], 0
      %s85 = sshll.u32 %s7, 4
      %s86 = int_to_ptr.hbm [resolvable:$true] %s85
      %s87 = sshll.u32 [#allocation10], 4
      %s88 = int_to_ptr.vmem [resolvable:$true] %s87
      %93 = dma.hbm_to_vmem [thread:$0]  %s86, 1024, %s88, [#allocation9], 64, 64, 4
    $region33: #{tpu_custom_call.1} parent=1 // pred_fallthru
      _
    // Predicated region
    $region34: #{tpu_custom_call.1} parent=1 // pred_check
      _
    $region35: #{tpu_custom_call.1} parent=1 // pred_check_branch
      %95 = sbr.rel (0) target = $region37
    $region36: #{tpu_custom_call.1} parent=1 // pred_region
      _
    $region37: #{tpu_custom_call.1} parent=1 // pred_fallthru
      _
    // Predicated region
    $region38: #{tpu_custom_call.1} parent=1 // pred_check
      _
    $region39: #{tpu_custom_call.1} parent=1 // pred_check_branch
      %97 = sbr.rel (0) target = $region41
    $region40: #{tpu_custom_call.1} parent=1 // pred_region
      %99 = vsyncadd [#allocation12], 0
      %s100 = sshll.u32 %s9, 4
      %s101 = int_to_ptr.hbm [resolvable:$true] %s100
      %s102 = sshll.u32 [#allocation11], 4
      %s103 = int_to_ptr.vmem [resolvable:$true] %s102
      %108 = dma.hbm_to_vmem [thread:$0]  %s101, 1024, %s103, [#allocation12], 64, 64, 4
    $region41: #{tpu_custom_call.1} parent=1 // pred_fallthru
      _
    // Predicated region
    $region42: #{tpu_custom_call.1} parent=1 // pred_check
      _
    $region43: #{tpu_custom_call.1} parent=1 // pred_check_branch
      %110 = sbr.rel (0) target = $region45
    $region44: #{tpu_custom_call.1} parent=1 // pred_region
      _
    $region45: #{tpu_custom_call.1} parent=1 // pred_fallthru
      _
    // Predicated region
    $region46: #{tpu_custom_call.1} parent=1 // pred_check
      _
    $region47: #{tpu_custom_call.1} parent=1 // pred_check_branch
      %112 = sbr.rel (0) target = $region49
    $region48: #{tpu_custom_call.1} parent=1 // pred_region
      %114 = vsyncadd [#allocation12], 0
      %s115 = sshll.u32 %s11, 4
      %s116 = int_to_ptr.hbm [resolvable:$true] %s115
      %s117 = sshll.u32 [#allocation13], 4
      %s118 = int_to_ptr.vmem [resolvable:$true] %s117
      %123 = dma.hbm_to_vmem [thread:$0]  %s116, 1024, %s118, [#allocation12], 64, 64, 4
    $region49: #{tpu_custom_call.1} parent=1 // pred_fallthru
      _
    // Predicated region
    $region50: #{tpu_custom_call.1} parent=1 // pred_check
      _
    $region51: #{tpu_custom_call.1} parent=1 // pred_check_branch
      %125 = sbr.rel (0) target = $region53
    $region52: #{tpu_custom_call.1} parent=1 // pred_region
      _
    $region53: #{tpu_custom_call.1} parent=1 // pred_fallthru
      _
    // Predicated region
    $region54: #{tpu_custom_call.1} parent=1 // pred_check
      _
    $region55: #{tpu_custom_call.1} parent=1 // pred_check_branch
      %127 = sbr.rel (0) target = $region57
    $region56: #{tpu_custom_call.1} parent=1 // pred_region
      %129 = dma.done [#allocation3], 128
    $region57: #{tpu_custom_call.1} parent=1 // pred_fallthru
      _
    // Predicated region
    $region58: #{tpu_custom_call.1} parent=1 // pred_check
      _
    $region59: #{tpu_custom_call.1} parent=1 // pred_check_branch
      %131 = sbr.rel (0) target = $region61
    $region60: #{tpu_custom_call.1} parent=1 // pred_region
      %133 = dma.done [#allocation6], 256
    $region61: #{tpu_custom_call.1} parent=1 // pred_fallthru
      _
    // Predicated region
    $region62: #{tpu_custom_call.1} parent=1 // pred_check
      _
    $region63: #{tpu_custom_call.1} parent=1 // pred_check_branch
      %135 = sbr.rel (0) target = $region65
    $region64: #{tpu_custom_call.1} parent=1 // pred_region
      %137 = dma.done [#allocation6], 1024
    $region65: #{tpu_custom_call.1} parent=1 // pred_fallthru
      _
    // Predicated region
    $region66: #{tpu_custom_call.1} parent=1 // pred_check
      _
    $region67: #{tpu_custom_call.1} parent=1 // pred_check_branch
      %139 = sbr.rel (0) target = $region69
    $region68: #{tpu_custom_call.1} parent=1 // pred_region
      %141 = dma.done [#allocation9], 1024
    $region69: #{tpu_custom_call.1} parent=1 // pred_fallthru
      _
    // Predicated region
    $region70: #{tpu_custom_call.1} parent=1 // pred_check
      _
    $region71: #{tpu_custom_call.1} parent=1 // pred_check_branch
      %143 = sbr.rel (0) target = $region73
    $region72: #{tpu_custom_call.1} parent=1 // pred_region
      %145 = dma.done [#allocation9], 1024
    $region73: #{tpu_custom_call.1} parent=1 // pred_fallthru
      _
    // Predicated region
    $region74: #{tpu_custom_call.1} parent=1 // pred_check
      _
    $region75: #{tpu_custom_call.1} parent=1 // pred_check_branch
      %147 = sbr.rel (0) target = $region77
    $region76: #{tpu_custom_call.1} parent=1 // pred_region
      %149 = dma.done [#allocation12], 1024
    $region77: #{tpu_custom_call.1} parent=1 // pred_fallthru
      _
    // Predicated region
    $region78: #{tpu_custom_call.1} parent=1 // pred_check
      _
    $region79: #{tpu_custom_call.1} parent=1 // pred_check_branch
      %151 = sbr.rel (0) target = $region81
    $region80: #{tpu_custom_call.1} parent=1 // pred_region
      %153 = dma.done [#allocation12], 1024
    $region81: #{tpu_custom_call.1} parent=1 // pred_fallthru
      _
    %v155 = vld [vmem:[#allocation2] sm:$0xf]
    %v156 = vld [vmem:[#allocation2 + $0x4] sm:$0xf]
    %v157 = vld [vmem:[#allocation5] sm:$0xf]
    %v158 = vld [vmem:[#allocation5 + $0x4] sm:$0xf]
    %v159 = vld [vmem:[#allocation5 + $0x8] sm:$0xf]
    %v160 = vld [vmem:[#allocation5 + $0xc] sm:$0xf]
    %v161 = vld [vmem:[%s2] sm:$0x1]
    %v163 = vperm.slane %v161, 0
    %v167 = vunpack.c.l.b16 %v155
    %v168 = vunpack.c.l.b16 %v156
    %v169 = vpack.c.b16 %v168, %v167
    %v174 = vunpack.c.l.b16 %v157
    %v175 = vunpack.c.l.b16 %v158
    %v176 = vunpack.c.l.b16 %v159
    %v177 = vunpack.c.l.b16 %v160
    %v178 = vpack.c.b16 %v175, %v174
    %v179 = vpack.c.b16 %v177, %v176
    %vm182 = vcmask 261120
    %v184 = vsel %vm182, %v169, 0
    %186 = vmatpush.bf16.msra.mxu0 0
    %187 = vmatpush.bf16.msra.mxu0 0
    %188 = vmatpush.bf16.msra.mxu0 0
    %189 = vmatpush.bf16.msra.mxu0 0
    %190 = vmatpush.bf16.msra.mxu0 0
    %191 = vmatpush.bf16.msra.mxu0 0
    %192 = vmatpush.bf16.msra.mxu0 %v179
    %193 = vmatpush.bf16.msra.mxu0 %v178
    %194 = vmatmul.bf16.gmra.mxu0 %v184
    %v195 = vpop.f32.mrf.mxu0
    %v196 = vadd.f32 %v163, %v195
    %v197 = vpop.f32.mrf.mxu0
    %v198 = vadd.f32 %v163, %v197
    %199 = vdwg.mxu0
    %v200 = vmax.f32 %v196, 0.0
    %v201 = vmax.f32 %v198, 0.0
    %v202 = vpack.c.bf16 %v201, %v200
    %v203 = vld [vmem:[#allocation7] sm:$0xf]
    %v204 = vld [vmem:[#allocation7 + $0x4] sm:$0xf]
    %v205 = vld [vmem:[#allocation7 + $0x8] sm:$0xf]
    %v206 = vld [vmem:[#allocation7 + $0xc] sm:$0xf]
    %v207 = vld [vmem:[#allocation7 + $0x10] sm:$0xf]
    %v208 = vld [vmem:[#allocation7 + $0x14] sm:$0xf]
    %v209 = vld [vmem:[#allocation7 + $0x18] sm:$0xf]
    %v210 = vld [vmem:[#allocation7 + $0x1c] sm:$0xf]
    %v211 = vld [vmem:[#allocation7 + $0x20] sm:$0xf]
    %v212 = vld [vmem:[#allocation7 + $0x24] sm:$0xf]
    %v213 = vld [vmem:[#allocation7 + $0x28] sm:$0xf]
    %v214 = vld [vmem:[#allocation7 + $0x2c] sm:$0xf]
    %v215 = vld [vmem:[#allocation7 + $0x30] sm:$0xf]
    %v216 = vld [vmem:[#allocation7 + $0x34] sm:$0xf]
    %v217 = vld [vmem:[#allocation7 + $0x38] sm:$0xf]
    %v218 = vld [vmem:[#allocation7 + $0x3c] sm:$0xf]
    %v219 = vld [vmem:[%s4] sm:$0x1]
    %v221 = vperm.slane %v219, 0
    %v239 = vunpack.c.l.b16 %v203
    %v240 = vunpack.c.l.b16 %v204
    %v241 = vunpack.c.l.b16 %v205
    %v242 = vunpack.c.l.b16 %v206
    %v243 = vunpack.c.l.b16 %v207
    %v244 = vunpack.c.l.b16 %v208
    %v245 = vunpack.c.l.b16 %v209
    %v246 = vunpack.c.l.b16 %v210
    %v247 = vunpack.c.l.b16 %v211
    %v248 = vunpack.c.l.b16 %v212
    %v249 = vunpack.c.l.b16 %v213
    %v250 = vunpack.c.l.b16 %v214
    %v251 = vunpack.c.l.b16 %v215
    %v252 = vunpack.c.l.b16 %v216
    %v253 = vunpack.c.l.b16 %v217
    %v254 = vunpack.c.l.b16 %v218
    %v255 = vpack.c.b16 %v240, %v239
    %v256 = vpack.c.b16 %v242, %v241
    %v257 = vpack.c.b16 %v244, %v243
    %v258 = vpack.c.b16 %v246, %v245
    %v259 = vpack.c.b16 %v248, %v247
    %v260 = vpack.c.b16 %v250, %v249
    %v261 = vpack.c.b16 %v252, %v251
    %v262 = vpack.c.b16 %v254, %v253
    %271 = vmatpush.bf16.msra.mxu0 %v262
    %272 = vmatpush.bf16.msra.mxu0 %v261
    %273 = vmatpush.bf16.msra.mxu0 %v260
    %274 = vmatpush.bf16.msra.mxu0 %v259
    %275 = vmatpush.bf16.msra.mxu0 %v258
    %276 = vmatpush.bf16.msra.mxu0 %v257
    %277 = vmatpush.bf16.msra.mxu0 %v256
    %278 = vmatpush.bf16.msra.mxu0 %v255
    %279 = vmatmul.bf16.gmra.mxu0 %v202
    %v280 = vpop.f32.mrf.mxu0
    %v281 = vadd.f32 %v221, %v280
    %v282 = vpop.f32.mrf.mxu0
    %v283 = vadd.f32 %v221, %v282
    %284 = vdwg.mxu0
    %v285 = vmax.f32 %v281, 0.0
    %v286 = vmax.f32 %v283, 0.0
    %v287 = vpack.c.bf16 %v286, %v285
    %v288 = vld [vmem:[#allocation8] sm:$0xf]
    %v289 = vld [vmem:[#allocation8 + $0x4] sm:$0xf]
    %v290 = vld [vmem:[#allocation8 + $0x8] sm:$0xf]
    %v291 = vld [vmem:[#allocation8 + $0xc] sm:$0xf]
    %v292 = vld [vmem:[#allocation8 + $0x10] sm:$0xf]
    %v293 = vld [vmem:[#allocation8 + $0x14] sm:$0xf]
    %v294 = vld [vmem:[#allocation8 + $0x18] sm:$0xf]
    %v295 = vld [vmem:[#allocation8 + $0x1c] sm:$0xf]
    %v296 = vld [vmem:[#allocation8 + $0x20] sm:$0xf]
    %v297 = vld [vmem:[#allocation8 + $0x24] sm:$0xf]
    %v298 = vld [vmem:[#allocation8 + $0x28] sm:$0xf]
    %v299 = vld [vmem:[#allocation8 + $0x2c] sm:$0xf]
    %v300 = vld [vmem:[#allocation8 + $0x30] sm:$0xf]
    %v301 = vld [vmem:[#allocation8 + $0x34] sm:$0xf]
    %v302 = vld [vmem:[#allocation8 + $0x38] sm:$0xf]
    %v303 = vld [vmem:[#allocation8 + $0x3c] sm:$0xf]
    %v304 = vld [vmem:[%s6] sm:$0x1]
    %v306 = vperm.slane %v304, 0
    %v324 = vunpack.c.l.b16 %v288
    %v325 = vunpack.c.l.b16 %v289
    %v326 = vunpack.c.l.b16 %v290
    %v327 = vunpack.c.l.b16 %v291
    %v328 = vunpack.c.l.b16 %v292
    %v329 = vunpack.c.l.b16 %v293
    %v330 = vunpack.c.l.b16 %v294
    %v331 = vunpack.c.l.b16 %v295
    %v332 = vunpack.c.l.b16 %v296
    %v333 = vunpack.c.l.b16 %v297
    %v334 = vunpack.c.l.b16 %v298
    %v335 = vunpack.c.l.b16 %v299
    %v336 = vunpack.c.l.b16 %v300
    %v337 = vunpack.c.l.b16 %v301
    %v338 = vunpack.c.l.b16 %v302
    %v339 = vunpack.c.l.b16 %v303
    %v340 = vpack.c.b16 %v325, %v324
    %v341 = vpack.c.b16 %v327, %v326
    %v342 = vpack.c.b16 %v329, %v328
    %v343 = vpack.c.b16 %v331, %v330
    %v344 = vpack.c.b16 %v333, %v332
    %v345 = vpack.c.b16 %v335, %v334
    %v346 = vpack.c.b16 %v337, %v336
    %v347 = vpack.c.b16 %v339, %v338
    %356 = vmatpush.bf16.msra.mxu0 %v347
    %357 = vmatpush.bf16.msra.mxu0 %v346
    %358 = vmatpush.bf16.msra.mxu0 %v345
    %359 = vmatpush.bf16.msra.mxu0 %v344
    %360 = vmatpush.bf16.msra.mxu0 %v343
    %361 = vmatpush.bf16.msra.mxu0 %v342
    %362 = vmatpush.bf16.msra.mxu0 %v341
    %363 = vmatpush.bf16.msra.mxu0 %v340
    %364 = vmatmul.bf16.gmra.mxu0 %v287
    %v365 = vpop.f32.mrf.mxu0
    %v366 = vadd.f32 %v306, %v365
    %v367 = vpop.f32.mrf.mxu0
    %v368 = vadd.f32 %v306, %v367
    %369 = vdwg.mxu0
    %v370 = vmax.f32 %v366, 0.0
    %v371 = vmax.f32 %v368, 0.0
    %v372 = vpack.c.bf16 %v371, %v370
    %v373 = vld [vmem:[#allocation10] sm:$0xf]
    %v374 = vld [vmem:[#allocation10 + $0x4] sm:$0xf]
    %v375 = vld [vmem:[#allocation10 + $0x8] sm:$0xf]
    %v376 = vld [vmem:[#allocation10 + $0xc] sm:$0xf]
    %v377 = vld [vmem:[#allocation10 + $0x10] sm:$0xf]
    %v378 = vld [vmem:[#allocation10 + $0x14] sm:$0xf]
    %v379 = vld [vmem:[#allocation10 + $0x18] sm:$0xf]
    %v380 = vld [vmem:[#allocation10 + $0x1c] sm:$0xf]
    %v381 = vld [vmem:[#allocation10 + $0x20] sm:$0xf]
    %v382 = vld [vmem:[#allocation10 + $0x24] sm:$0xf]
    %v383 = vld [vmem:[#allocation10 + $0x28] sm:$0xf]
    %v384 = vld [vmem:[#allocation10 + $0x2c] sm:$0xf]
    %v385 = vld [vmem:[#allocation10 + $0x30] sm:$0xf]
    %v386 = vld [vmem:[#allocation10 + $0x34] sm:$0xf]
    %v387 = vld [vmem:[#allocation10 + $0x38] sm:$0xf]
    %v388 = vld [vmem:[#allocation10 + $0x3c] sm:$0xf]
    %v389 = vld [vmem:[%s8] sm:$0x1]
    %v391 = vperm.slane %v389, 0
    %v409 = vunpack.c.l.b16 %v373
    %v410 = vunpack.c.l.b16 %v374
    %v411 = vunpack.c.l.b16 %v375
    %v412 = vunpack.c.l.b16 %v376
    %v413 = vunpack.c.l.b16 %v377
    %v414 = vunpack.c.l.b16 %v378
    %v415 = vunpack.c.l.b16 %v379
    %v416 = vunpack.c.l.b16 %v380
    %v417 = vunpack.c.l.b16 %v381
    %v418 = vunpack.c.l.b16 %v382
    %v419 = vunpack.c.l.b16 %v383
    %v420 = vunpack.c.l.b16 %v384
    %v421 = vunpack.c.l.b16 %v385
    %v422 = vunpack.c.l.b16 %v386
    %v423 = vunpack.c.l.b16 %v387
    %v424 = vunpack.c.l.b16 %v388
    %v425 = vpack.c.b16 %v410, %v409
    %v426 = vpack.c.b16 %v412, %v411
    %v427 = vpack.c.b16 %v414, %v413
    %v428 = vpack.c.b16 %v416, %v415
    %v429 = vpack.c.b16 %v418, %v417
    %v430 = vpack.c.b16 %v420, %v419
    %v431 = vpack.c.b16 %v422, %v421
    %v432 = vpack.c.b16 %v424, %v423
    %441 = vmatpush.bf16.msra.mxu0 %v432
    %442 = vmatpush.bf16.msra.mxu0 %v431
    %443 = vmatpush.bf16.msra.mxu0 %v430
    %444 = vmatpush.bf16.msra.mxu0 %v429
    %445 = vmatpush.bf16.msra.mxu0 %v428
    %446 = vmatpush.bf16.msra.mxu0 %v427
    %447 = vmatpush.bf16.msra.mxu0 %v426
    %448 = vmatpush.bf16.msra.mxu0 %v425
    %449 = vmatmul.bf16.gmra.mxu0 %v372
    %v450 = vpop.f32.mrf.mxu0
    %v451 = vadd.f32 %v391, %v450
    %v452 = vpop.f32.mrf.mxu0
    %v453 = vadd.f32 %v391, %v452
    %454 = vdwg.mxu0
    %v455 = vmax.f32 %v451, 0.0
    %v456 = vmax.f32 %v453, 0.0
    %v457 = vpack.c.bf16 %v456, %v455
    %v458 = vld [vmem:[#allocation11] sm:$0xf]
    %v459 = vld [vmem:[#allocation11 + $0x4] sm:$0xf]
    %v460 = vld [vmem:[#allocation11 + $0x8] sm:$0xf]
    %v461 = vld [vmem:[#allocation11 + $0xc] sm:$0xf]
    %v462 = vld [vmem:[#allocation11 + $0x10] sm:$0xf]
    %v463 = vld [vmem:[#allocation11 + $0x14] sm:$0xf]
    %v464 = vld [vmem:[#allocation11 + $0x18] sm:$0xf]
    %v465 = vld [vmem:[#allocation11 + $0x1c] sm:$0xf]
    %v466 = vld [vmem:[#allocation11 + $0x20] sm:$0xf]
    %v467 = vld [vmem:[#allocation11 + $0x24] sm:$0xf]
    %v468 = vld [vmem:[#allocation11 + $0x28] sm:$0xf]
    %v469 = vld [vmem:[#allocation11 + $0x2c] sm:$0xf]
    %v470 = vld [vmem:[#allocation11 + $0x30] sm:$0xf]
    %v471 = vld [vmem:[#allocation11 + $0x34] sm:$0xf]
    %v472 = vld [vmem:[#allocation11 + $0x38] sm:$0xf]
    %v473 = vld [vmem:[#allocation11 + $0x3c] sm:$0xf]
    %v474 = vld [vmem:[%s10] sm:$0x1]
    %v476 = vperm.slane %v474, 0
    %v494 = vunpack.c.l.b16 %v458
    %v495 = vunpack.c.l.b16 %v459
    %v496 = vunpack.c.l.b16 %v460
    %v497 = vunpack.c.l.b16 %v461
    %v498 = vunpack.c.l.b16 %v462
    %v499 = vunpack.c.l.b16 %v463
    %v500 = vunpack.c.l.b16 %v464
    %v501 = vunpack.c.l.b16 %v465
    %v502 = vunpack.c.l.b16 %v466
    %v503 = vunpack.c.l.b16 %v467
    %v504 = vunpack.c.l.b16 %v468
    %v505 = vunpack.c.l.b16 %v469
    %v506 = vunpack.c.l.b16 %v470
    %v507 = vunpack.c.l.b16 %v471
    %v508 = vunpack.c.l.b16 %v472
    %v509 = vunpack.c.l.b16 %v473
    %v510 = vpack.c.b16 %v495, %v494
    %v511 = vpack.c.b16 %v497, %v496
    %v512 = vpack.c.b16 %v499, %v498
    %v513 = vpack.c.b16 %v501, %v500
    %v514 = vpack.c.b16 %v503, %v502
    %v515 = vpack.c.b16 %v505, %v504
    %v516 = vpack.c.b16 %v507, %v506
    %v517 = vpack.c.b16 %v509, %v508
    %526 = vmatpush.bf16.msra.mxu0 %v517
    %527 = vmatpush.bf16.msra.mxu0 %v516
    %528 = vmatpush.bf16.msra.mxu0 %v515
    %529 = vmatpush.bf16.msra.mxu0 %v514
    %530 = vmatpush.bf16.msra.mxu0 %v513
    %531 = vmatpush.bf16.msra.mxu0 %v512
    %532 = vmatpush.bf16.msra.mxu0 %v511
    %533 = vmatpush.bf16.msra.mxu0 %v510
    %534 = vmatmul.bf16.gmra.mxu0 %v457
    %v535 = vpop.f32.mrf.mxu0
    %v536 = vadd.f32 %v476, %v535
    %v537 = vpop.f32.mrf.mxu0
    %v538 = vadd.f32 %v476, %v537
    %539 = vdwg.mxu0
    %v540 = vmax.f32 %v536, 0.0
    %v541 = vmax.f32 %v538, 0.0
    %v542 = vpack.c.bf16 %v541, %v540
    %v543 = vld [vmem:[#allocation13] sm:$0xf]
    %v544 = vld [vmem:[#allocation13 + $0x4] sm:$0xf]
    %v545 = vld [vmem:[#allocation13 + $0x8] sm:$0xf]
    %v546 = vld [vmem:[#allocation13 + $0xc] sm:$0xf]
    %v547 = vld [vmem:[#allocation13 + $0x10] sm:$0xf]
    %v548 = vld [vmem:[#allocation13 + $0x14] sm:$0xf]
    %v549 = vld [vmem:[#allocation13 + $0x18] sm:$0xf]
    %v550 = vld [vmem:[#allocation13 + $0x1c] sm:$0xf]
    %v551 = vld [vmem:[#allocation13 + $0x20] sm:$0xf]
    %v552 = vld [vmem:[#allocation13 + $0x24] sm:$0xf]
    %v553 = vld [vmem:[#allocation13 + $0x28] sm:$0xf]
    %v554 = vld [vmem:[#allocation13 + $0x2c] sm:$0xf]
    %v555 = vld [vmem:[#allocation13 + $0x30] sm:$0xf]
    %v556 = vld [vmem:[#allocation13 + $0x34] sm:$0xf]
    %v557 = vld [vmem:[#allocation13 + $0x38] sm:$0xf]
    %v558 = vld [vmem:[#allocation13 + $0x3c] sm:$0xf]
    %v559 = vld [vmem:[%s12] sm:$0x1]
    %v561 = vperm.slane %v559, 0
    %v579 = vunpack.c.l.b16 %v543
    %v580 = vunpack.c.l.b16 %v544
    %v581 = vunpack.c.l.b16 %v545
    %v582 = vunpack.c.l.b16 %v546
    %v583 = vunpack.c.l.b16 %v547
    %v584 = vunpack.c.l.b16 %v548
    %v585 = vunpack.c.l.b16 %v549
    %v586 = vunpack.c.l.b16 %v550
    %v587 = vunpack.c.l.b16 %v551
    %v588 = vunpack.c.l.b16 %v552
    %v589 = vunpack.c.l.b16 %v553
    %v590 = vunpack.c.l.b16 %v554
    %v591 = vunpack.c.l.b16 %v555
    %v592 = vunpack.c.l.b16 %v556
    %v593 = vunpack.c.l.b16 %v557
    %v594 = vunpack.c.l.b16 %v558
    %v595 = vpack.c.b16 %v580, %v579
    %v596 = vpack.c.b16 %v582, %v581
    %v597 = vpack.c.b16 %v584, %v583
    %v598 = vpack.c.b16 %v586, %v585
    %v599 = vpack.c.b16 %v588, %v587
    %v600 = vpack.c.b16 %v590, %v589
    %v601 = vpack.c.b16 %v592, %v591
    %v602 = vpack.c.b16 %v594, %v593
    %611 = vmatpush.bf16.msra.mxu0 %v602
    %612 = vmatpush.bf16.msra.mxu0 %v601
    %613 = vmatpush.bf16.msra.mxu0 %v600
    %614 = vmatpush.bf16.msra.mxu0 %v599
    %615 = vmatpush.bf16.msra.mxu0 %v598
    %616 = vmatpush.bf16.msra.mxu0 %v597
    %617 = vmatpush.bf16.msra.mxu0 %v596
    %618 = vmatpush.bf16.msra.mxu0 %v595
    %619 = vmatmul.bf16.gmra.mxu0 %v542
    %v620 = vpop.f32.mrf.mxu0
    %v621 = vadd.f32 %v561, %v620
    %v622 = vpop.f32.mrf.mxu0
    %v623 = vadd.f32 %v561, %v622
    %624 = vdwg.mxu0
    %v625 = vmax.f32 %v621, 0.0
    %v626 = vmax.f32 %v623, 0.0
    %627 = vst [vmem:[#allocation14] sm:$0xff] %v625
    %628 = vst [vmem:[#allocation14 + $0x8] sm:$0xff] %v626
    // Predicated region
    $region82: #{tpu_custom_call.1} parent=1 // pred_check
      _
    $region83: #{tpu_custom_call.1} parent=1 // pred_check_branch
      %630 = sbr.rel (0) target = $region85
    $region84: #{tpu_custom_call.1} parent=1 // pred_region
      %632 = vsyncadd [#allocation4], 0
      %s633 = sshll.u32 [#allocation14], 4
      %s634 = int_to_ptr.vmem [resolvable:$true] %s633
      %s635 = sshll.u32 %s13, 4
      %s636 = int_to_ptr.hbm [resolvable:$true] %s635
      %641 = dma.vmem_to_hbm [thread:$0]  %s634, 256, %s636, [#allocation4], 128, 128, 8
    $region85: #{tpu_custom_call.1} parent=1 // pred_fallthru
      _
    // Predicated region
    $region86: #{tpu_custom_call.1} parent=1 // pred_check
      _
    $region87: #{tpu_custom_call.1} parent=1 // pred_check_branch
      %643 = sbr.rel (0) target = $region89
    $region88: #{tpu_custom_call.1} parent=1 // pred_region
      %645 = dma.done [#allocation4], 256
    $region89: #{tpu_custom_call.1} parent=1 // pred_fallthru
      _
    %646 = vsyncpa [#allocation3], 1
    %647 = vsyncpa [#allocation6], 1
    %648 = vsyncpa [#allocation9], 1
    %649 = vsyncpa [#allocation12], 1
    %650 = vsyncpa [#allocation4], 1

</llo_original>
